<compile_context>
chip_gen: v5e
topology: v5e:2x2
jax: 0.10.0
libtpu: 0.0.40
codegen_flags: <defaults>
</compile_context>

<pallas_src>
import jax
import jax.numpy as jnp
from jax.experimental import pallas as pl
from jax.experimental.pallas import tpu as pltpu


def _mm_cat_kernel(x1_ref, x2_ref, o_ref):
    """o = tile(x1 @ x2, (2, 6)); tiny-K matmul done as VPU rank-1 FMAs."""
    x1 = x1_ref[...]                       # (M, K), K tiny (2)
    x2 = x2_ref[...]                       # (K, N)
    M, K = x1.shape
    # K rank-1 updates: (M,1) * (1,N) broadcast-multiplies on the VPU.
    acc = x1[:, 0:1] * x2[0:1, :]
    for k in range(1, K):                  # static unroll (K is compile-time)
        acc = acc + x1[:, k:k + 1] * x2[k:k + 1, :]
    # Repaired cat semantics folded into the store:
    #   t2 = cat([v2, v2], 0); out = cat([t2]*6, 1)  ==  tile(v2, (2, 6)).
    row_block = jnp.concatenate([acc] * 6, axis=1).astype(o_ref.dtype)  # (M, 6N)
    o_ref[0:M, :] = row_block              # rows 0..M-1
    o_ref[M:2 * M, :] = row_block          # rows M..2M-1


def cat_mm_forward(x1, x2):
    """x1: (M, K), x2: (K, N) -> (2*M, 6*N) float32 (repaired cat semantics)."""
    M, K = x1.shape
    K2, N = x2.shape
    assert K2 == K
    out_rows, out_cols = 2 * M, 6 * N
    bytes_accessed = 4 * (x1.size + x2.size + out_rows * out_cols)  # ~3.2 KiB
    return pl.pallas_call(
        _mm_cat_kernel,
        out_shape=jax.ShapeDtypeStruct((out_rows, out_cols), jnp.float32),
        in_specs=[
            pl.BlockSpec(memory_space=pltpu.MemorySpace.VMEM),
            pl.BlockSpec(memory_space=pltpu.MemorySpace.VMEM),
        ],
        out_specs=pl.BlockSpec(memory_space=pltpu.MemorySpace.VMEM),
        cost_estimate=pl.CostEstimate(
            flops=2 * M * K * N,
            transcendentals=0,
            bytes_accessed=bytes_accessed,
        ),
    )(x1, x2)


def _reference(x1, x2):
    v2 = x1 @ x2
    t2 = jnp.concatenate([v2, v2], axis=0)
    return jnp.concatenate([t2] * 6, axis=1)


if __name__ == "__main__":
    key = jax.random.PRNGKey(0)
    k1, k2 = jax.random.split(key)
    # Shapes implied by the module's global inputs: x1 (8, 2), x2 (2, 8).
    x1 = jax.random.normal(k1, (8, 2), dtype=jnp.float32)
    x2 = jax.random.normal(k2, (2, 8), dtype=jnp.float32)

    out = cat_mm_forward(x1, x2)
    out = jax.block_until_ready(out)

    ref = _reference(x1, x2)
    assert out.shape == (16, 48), out.shape
    assert jnp.allclose(out, ref, atol=1e-5, rtol=1e-5)

    print("KERNEL_OK")
</pallas_src>

<mosaic_0001>
module attributes {stable_mosaic.version = 11 : i64} {
  func.func @_mm_cat_kernel(%arg0: memref<8x2xf32, #tpu.memory_space<vmem>>, %arg1: memref<2x8xf32, #tpu.memory_space<vmem>>, %arg2: memref<16x48xf32, #tpu.memory_space<vmem>>) attributes {dimension_semantics = [], scalar_prefetch = 0 : i64, scratch_operands = 0 : i64, tpu.core_type = #tpu.core_type<tc>} {
    %c0 = arith.constant 0 : index
    %c0_0 = arith.constant 0 : index
    %0 = vector.load %arg0[%c0, %c0_0] : memref<8x2xf32, #tpu.memory_space<vmem>>, vector<8x2xf32>
    %c0_1 = arith.constant 0 : index
    %c0_2 = arith.constant 0 : index
    %1 = vector.load %arg1[%c0_1, %c0_2] : memref<2x8xf32, #tpu.memory_space<vmem>>, vector<2x8xf32>
    %2 = vector.extract_strided_slice %0 {offsets = [0, 0], sizes = [8, 1], strides = [1, 1]} : vector<8x2xf32> to vector<8x1xf32>
    %3 = vector.extract_strided_slice %1 {offsets = [0, 0], sizes = [1, 8], strides = [1, 1]} : vector<2x8xf32> to vector<1x8xf32>
    %4 = vector.broadcast %2 : vector<8x1xf32> to vector<8x8xf32>
    %5 = vector.broadcast %3 : vector<1x8xf32> to vector<8x8xf32>
    %6 = arith.mulf %4, %5 : vector<8x8xf32>
    %7 = vector.extract_strided_slice %0 {offsets = [0, 1], sizes = [8, 1], strides = [1, 1]} : vector<8x2xf32> to vector<8x1xf32>
    %8 = vector.extract_strided_slice %1 {offsets = [1, 0], sizes = [1, 8], strides = [1, 1]} : vector<2x8xf32> to vector<1x8xf32>
    %9 = vector.broadcast %7 : vector<8x1xf32> to vector<8x8xf32>
    %10 = vector.broadcast %8 : vector<1x8xf32> to vector<8x8xf32>
    %11 = arith.mulf %9, %10 : vector<8x8xf32>
    %12 = arith.addf %6, %11 : vector<8x8xf32>
    %13 = tpu.concatenate %12, %12, %12, %12, %12, %12 in 1 : vector<8x8xf32>, vector<8x8xf32>, vector<8x8xf32>, vector<8x8xf32>, vector<8x8xf32>, vector<8x8xf32> -> vector<8x48xf32>
    %c0_3 = arith.constant 0 : index
    %c0_4 = arith.constant 0 : index
    %14 = vector.load %arg2[%c0_3, %c0_4] : memref<16x48xf32, #tpu.memory_space<vmem>>, vector<8x48xf32>
    tpu.vector_store %arg2[%c0_3, %c0_4], %13 {strides = array<i32>} : memref<16x48xf32, #tpu.memory_space<vmem>>, vector<8x48xf32>,
    %c8 = arith.constant 8 : index
    %c0_5 = arith.constant 0 : index
    %15 = vector.load %arg2[%c8, %c0_5] : memref<16x48xf32, #tpu.memory_space<vmem>>, vector<8x48xf32>
    tpu.vector_store %arg2[%c8, %c0_5], %13 {strides = array<i32>} : memref<16x48xf32, #tpu.memory_space<vmem>>, vector<8x48xf32>,
    return
  }
}

</mosaic_0001>

<llo_original>
// kernel: tpu_custom_call.1
$region0: #{tpu_custom_call.1}
  #allocation0 [shape = 'u32[]', space=smem, size = 0x4, offset = 0x4, fixed_abs, tag = 'smem constant byte address 0x4 - core index']
  #allocation1 [shape = 'u32[72,128]{1,0:T(1,128)}', space=vmem, size = 0x9000, scoped, tag = 'internal scratch']
  %s0 = inlined_call_operand.vmem [shape: f32[8,2], index: 0, kind: input, shape index: {}]
  %s1 = inlined_call_operand.vmem [shape: f32[2,8], index: 1, kind: input, shape index: {}]
  %s2 = inlined_call_operand.hbm [shape: f32[16,48], index: 2, kind: output, shape index: {}]
  %s3 = sld [smem:[#allocation0]]
  $region18: #{tpu_custom_call.1} parent=0
    _
  %s5 = ssub.s32 1, %s3
  %s6 = scalar_select 0, %s5, %s3
  $region1: #{tpu_custom_call.1} parent=0
    #allocation2 [shape = 'u8[8192]{0}', space=vmem, size = 0x2000, scoped, tag = 'output window, operand 0, single buffered']
    #allocation3 [shape = 's32[1]{0}', space=sflag, size = 0x4, scoped, tag = 'scoped memory for tpu_custom_call.1']
    %7 = vsyncpa [#allocation3], 0
    // Predicated region
    $region2: #{tpu_custom_call.1} parent=1 // pred_check
      _
    $region3: #{tpu_custom_call.1} parent=1 // pred_check_branch
      %9 = sbr.rel (0) target = $region5
    $region4: #{tpu_custom_call.1} parent=1 // pred_region
      _
    $region5: #{tpu_custom_call.1} parent=1 // pred_fallthru
      _
    // Predicated region
    $region6: #{tpu_custom_call.1} parent=1 // pred_check
      _
    $region7: #{tpu_custom_call.1} parent=1 // pred_check_branch
      %11 = sbr.rel (0) target = $region9
    $region8: #{tpu_custom_call.1} parent=1 // pred_region
      _
    $region9: #{tpu_custom_call.1} parent=1 // pred_fallthru
      _
    %v12 = vld [vmem:[%s0] sm:$0xff]
    %v13 = vld [vmem:[%s1] sm:$0x3]
    %15 = vset.pattern.permute.xlu0 0
    %16 = vperm.xlu0 %15, %v12
    %v17 = vpop.permute.xlu0 %16
    %v19 = vperm.slane %v13, 0
    %v20 = vmul.f32 %v17, %v19
    %21 = vset.pattern.permute.xlu0 1
    %22 = vperm.xlu0 %21, %v12
    %v23 = vpop.permute.xlu0 %22
    %v25 = vperm.slane %v13, 1
    %v26 = vmul.f32 %v23, %v25
    %v27 = vadd.f32 %v20, %v26
    %29 = vrot.lane.b32.xlu0 %v27, 8
    %v30 = vpop.permute.xlu0 %29
    %32 = vrot.lane.b32.xlu0 %v27, 16
    %v33 = vpop.permute.xlu0 %32
    %35 = vrot.lane.b32.xlu0 %v27, 24
    %v36 = vpop.permute.xlu0 %35
    %38 = vrot.lane.b32.xlu0 %v27, 32
    %v39 = vpop.permute.xlu0 %38
    %41 = vrot.lane.b32.xlu0 %v27, 40
    %v42 = vpop.permute.xlu0 %41
    %vm44 = vcmask 64512
    %v45 = vsel %vm44, %v27, %v30
    %vm46 = vcmask 130048
    %v47 = vsel %vm46, %v45, %v33
    %vm48 = vcmask 195584
    %v49 = vsel %vm48, %v47, %v36
    %vm50 = vcmask 261120
    %v51 = vsel %vm50, %v49, %v39
    %vm52 = vcmask 326656
    %v53 = vsel %vm52, %v51, %v42
    %vm54 = vcmask 392192
    %55 = vst.msk [vmem:[#allocation2] sm:$0xff] %vm54, %v53
    %56 = vst.msk [vmem:[#allocation2 + $0x8] sm:$0xff] %vm54, %v53
    // Predicated region
    $region10: #{tpu_custom_call.1} parent=1 // pred_check
      _
    $region11: #{tpu_custom_call.1} parent=1 // pred_check_branch
      %58 = sbr.rel (0) target = $region13
    $region12: #{tpu_custom_call.1} parent=1 // pred_region
      %60 = vsyncadd [#allocation3], 0
      %s61 = sshll.u32 [#allocation2], 4
      %s62 = int_to_ptr.vmem [resolvable:$true] %s61
      %s63 = sshll.u32 %s2, 4
      %s64 = int_to_ptr.hbm [resolvable:$true] %s63
      %69 = dma.vmem_to_hbm [thread:$0]  %s62, 256, %s64, [#allocation3], 128, 128, 8
    $region13: #{tpu_custom_call.1} parent=1 // pred_fallthru
      _
    // Predicated region
    $region14: #{tpu_custom_call.1} parent=1 // pred_check
      _
    $region15: #{tpu_custom_call.1} parent=1 // pred_check_branch
      %71 = sbr.rel (0) target = $region17
    $region16: #{tpu_custom_call.1} parent=1 // pred_region
      %73 = dma.done [#allocation3], 256
    $region17: #{tpu_custom_call.1} parent=1 // pred_fallthru
      _
    %74 = vsyncpa [#allocation3], 1

</llo_original>
